<compile_context>
chip_gen: v7x
topology: tpu7x:2x2x1
jax: 0.10.0
libtpu: 0.0.40
codegen_flags: <defaults>
</compile_context>

<pallas_src>
import functools
import math

import jax
import jax.numpy as jnp
from jax.experimental import pallas as pl
from jax.experimental.pallas import tpu as pltpu


def _round_up(x, m):
    return ((x + m - 1) // m) * m


def _graph_chenn_kernel(x_ref, h0_ref, w_ref, o_ref, *,
                        alpha, theta, mxu_dtype, precision):
    x = x_ref[...]                       # (TM, F) f32
    h0 = h0_ref[...]                     # (TM, F) f32

    # support feeds only the MXU; epilogue uses folded constants below.
    support = (1.0 - alpha) * x + alpha * h0

    # theta was folded into w on the host, so mm == theta * (support @ W).
    mm = jnp.dot(support.astype(mxu_dtype), w_ref[...],
                 preferred_element_type=jnp.float32,
                 precision=precision)

    # output = theta*(support@W) + (1-theta)*support + x
    #        = mm + [(1-theta)(1-alpha) + 1] * x + (1-theta)*alpha * h0
    c1 = (1.0 - theta) * (1.0 - alpha) + 1.0
    c2 = (1.0 - theta) * alpha
    o_ref[...] = mm + c1 * x + c2 * h0


def graph_chenn(x, h0, weight, lamda, alpha, l, *, tm=None,
                mxu_dtype=jnp.bfloat16):
    """Pallas wrapper reproducing GraphChenn.forward."""
    n, f_in = x.shape
    f_out = weight.shape[1]
    assert weight.shape[0] == f_in
    assert f_in == f_out, "residual add requires in_features == out_features"
    f = f_in

    # theta computed host-side exactly like the PyTorch module
    theta = float(min(1.0, math.log(lamda / l + 1.0)))
    alpha = float(alpha)

    x = x.astype(jnp.float32)
    h0 = h0.astype(jnp.float32)
    # Fold theta into the (small) weight host-side; cast for the MXU path.
    w = (theta * weight.astype(jnp.float32)).astype(mxu_dtype)
    w_itemsize = jnp.dtype(mxu_dtype).itemsize

    exact_f32 = jnp.dtype(mxu_dtype) == jnp.dtype(jnp.float32)
    precision = jax.lax.Precision.HIGHEST if exact_f32 else None

    # ---- row-tile selection -------------------------------------------------
    if tm is None:
        tm = 2048 if f <= 256 else (1024 if f <= 512 else 512)
    # VMEM budget: 3 f32 streams double-buffered + double-buffered weight;
    # keep comfortably under v7x's 64 MiB physical VMEM per TensorCore.
    budget = 40 * 1024 * 1024
    w_bytes = 2 * f * f * w_itemsize
    stream_budget = max(budget - w_bytes, 6 * 8 * f * 4)
    tm_cap = max(8, int(stream_budget // (6 * f * 4)) // 8 * 8)
    tm = min(tm, tm_cap)
    # ensure >= 2 row tiles when possible so ("parallel",) uses both v7x TCs
    tm = min(tm, max(8, _round_up(pl.cdiv(n, 2), 8)))
    tm = max(8, (tm // 8) * 8)

    grid = (pl.cdiv(n, tm),)

    vmem_need = 3 * 2 * tm * f * 4 + w_bytes
    vmem_limit = int(min(48 * 1024 * 1024,
                         max(vmem_need + 4 * 1024 * 1024, 16 * 1024 * 1024)))

    kernel = functools.partial(_graph_chenn_kernel, alpha=alpha, theta=theta,
                               mxu_dtype=mxu_dtype, precision=precision)

    out = pl.pallas_call(
        kernel,
        out_shape=jax.ShapeDtypeStruct((n, f), jnp.float32),
        grid=grid,
        in_specs=[
            pl.BlockSpec((tm, f), lambda i: (i, 0)),      # input rows
            pl.BlockSpec((tm, f), lambda i: (i, 0)),      # h0 rows
            pl.BlockSpec((f, f), lambda i: (0, 0)),       # resident weight
        ],
        out_specs=pl.BlockSpec((tm, f), lambda i: (i, 0)),
        compiler_params=pltpu.CompilerParams(
            dimension_semantics=("parallel",),
            vmem_limit_bytes=vmem_limit,
        ),
        cost_estimate=pl.CostEstimate(
            flops=2 * n * f * f,
            bytes_accessed=int(4 * 3 * n * f + f * f * w_itemsize),
            transcendentals=0,
        ),
    )(x, h0, w)

    return out


# ----------------------------- references ------------------------------------

def _reference_f32(x, h0, weight, lamda, alpha, l):
    """Bit-faithful f32 version of the PyTorch forward."""
    theta = min(1.0, math.log(lamda / l + 1.0))
    support = (1.0 - alpha) * x + alpha * h0
    mm = jnp.dot(support, weight, precision=jax.lax.Precision.HIGHEST)
    return theta * mm + (1.0 - theta) * support + x


def _reference_bf16_mxu(x, h0, weight, lamda, alpha, l):
    """Same math with theta folded into W and bf16 MXU inputs / f32 acc."""
    theta = min(1.0, math.log(lamda / l + 1.0))
    support = (1.0 - alpha) * x + alpha * h0
    w_q = (theta * weight).astype(jnp.bfloat16)
    mm = jnp.dot(support.astype(jnp.bfloat16), w_q,
                 preferred_element_type=jnp.float32,
                 precision=jax.lax.Precision.HIGHEST)
    return mm + (1.0 - theta) * support + x


if __name__ == "__main__":
    lamda, alpha, l = 0.5, 0.1, 2
    key = jax.random.PRNGKey(0)

    # --- small shape consistent with the module: N nodes x hidden features ---
    N, F = 8, 32
    kx, kh, kw, key = jax.random.split(key, 4)
    x = jax.random.normal(kx, (N, F), dtype=jnp.float32)
    h0 = jax.random.normal(kh, (N, F), dtype=jnp.float32)
    stdv = 1.0 / math.sqrt(F)
    weight = jax.random.uniform(kw, (F, F), dtype=jnp.float32,
                                minval=-stdv, maxval=stdv)

    out = graph_chenn(x, h0, weight, lamda, alpha, l)
    jax.block_until_ready(out)
    assert out.shape == (N, F)
    assert jnp.allclose(out, _reference_bf16_mxu(x, h0, weight, lamda, alpha, l),
                        atol=1e-4, rtol=1e-3), "mismatch vs bf16-mxu ref (small)"
    assert jnp.allclose(out, _reference_f32(x, h0, weight, lamda, alpha, l),
                        atol=2e-2, rtol=2e-2), "mismatch vs f32 ref (small)"

    # exact-precision mode reproduces the module's f32 math
    out_exact = graph_chenn(x, h0, weight, lamda, alpha, l,
                            mxu_dtype=jnp.float32)
    jax.block_until_ready(out_exact)
    assert jnp.allclose(out_exact, _reference_f32(x, h0, weight, lamda, alpha, l),
                        atol=1e-5, rtol=1e-5), "mismatch vs f32 ref (exact mode)"

    # --- tiled + ragged shape: exercises the row grid, 2-tile split for v7x,
    #     and the masked (partial) last row block (N not a multiple of TM) ----
    N2, F2 = 1000, 128
    kx, kh, kw, key = jax.random.split(key, 4)
    x2 = jax.random.normal(kx, (N2, F2), dtype=jnp.float32)
    h02 = jax.random.normal(kh, (N2, F2), dtype=jnp.float32)
    stdv2 = 1.0 / math.sqrt(F2)
    w2 = jax.random.uniform(kw, (F2, F2), dtype=jnp.float32,
                            minval=-stdv2, maxval=stdv2)

    out2 = graph_chenn(x2, h02, w2, lamda, alpha, l)
    jax.block_until_ready(out2)
    assert out2.shape == (N2, F2)
    assert jnp.allclose(out2, _reference_bf16_mxu(x2, h02, w2, lamda, alpha, l),
                        atol=1e-4, rtol=1e-3), "mismatch vs bf16-mxu ref (tiled)"
    assert jnp.allclose(out2, _reference_f32(x2, h02, w2, lamda, alpha, l),
                        atol=2e-2, rtol=2e-2), "mismatch vs f32 ref (tiled)"

    print("KERNEL_OK")
</pallas_src>

<mosaic_0001>
module attributes {stable_mosaic.version = 11 : i64} {
  func.func @_graph_chenn_kernel(%arg0: i32, %arg1: memref<8x32xf32, #tpu.memory_space<vmem>>, %arg2: memref<8x32xf32, #tpu.memory_space<vmem>>, %arg3: memref<32x32xbf16, #tpu.memory_space<vmem>>, %arg4: memref<8x32xf32, #tpu.memory_space<vmem>>) attributes {dimension_semantics = [#tpu.dimension_semantics<parallel>], iteration_bounds = array<i64: 1>, scalar_prefetch = 0 : i64, scratch_operands = 0 : i64, tpu.core_type = #tpu.core_type<tc>, window_params = [{transform_indices = @transform_0, window_bounds = array<i64: 8, 32>}, {transform_indices = @transform_1, window_bounds = array<i64: 8, 32>}, {pipeline_mode = #tpu.pipeline_mode<synchronous>, transform_indices = @transform_2, window_bounds = array<i64: 32, 32>}, {transform_indices = @transform_3, window_bounds = array<i64: 8, 32>}]} {
    %c0 = arith.constant 0 : index
    %c0_0 = arith.constant 0 : index
    %0 = vector.load %arg1[%c0, %c0_0] : memref<8x32xf32, #tpu.memory_space<vmem>>, vector<8x32xf32>
    %c0_1 = arith.constant 0 : index
    %c0_2 = arith.constant 0 : index
    %1 = vector.load %arg2[%c0_1, %c0_2] : memref<8x32xf32, #tpu.memory_space<vmem>>, vector<8x32xf32>
    %cst = arith.constant 0.899999976 : f32
    %2 = vector.broadcast %cst : f32 to vector<8x32xf32>
    %3 = arith.mulf %2, %0 : vector<8x32xf32>
    %cst_3 = arith.constant 1.000000e-01 : f32
    %4 = vector.broadcast %cst_3 : f32 to vector<8x32xf32>
    %5 = arith.mulf %4, %1 : vector<8x32xf32>
    %6 = arith.addf %3, %5 : vector<8x32xf32>
    %7 = arith.truncf %6 : vector<8x32xf32> to vector<8x32xbf16>
    %c0_4 = arith.constant 0 : index
    %c0_5 = arith.constant 0 : index
    %8 = vector.load %arg3[%c0_4, %c0_5] : memref<32x32xbf16, #tpu.memory_space<vmem>>, vector<32x32xbf16>
    %cst_6 = arith.constant dense<0.000000e+00> : vector<8x32xf32>
    %9 = tpu.matmul %7, %8, %cst_6 {dimension_numbers = #tpu.dot_dimension_numbers<[1], [0], [0], [1], [0, 0, 1, 1], [], []>} : vector<8x32xbf16>, vector<32x32xbf16>, vector<8x32xf32> -> vector<8x32xf32>
    %cst_7 = arith.constant 1.69917083 : f32
    %10 = vector.broadcast %cst_7 : f32 to vector<8x32xf32>
    %11 = arith.mulf %10, %0 : vector<8x32xf32>
    %12 = arith.addf %9, %11 : vector<8x32xf32>
    %cst_8 = arith.constant 0.0776856467 : f32
    %13 = vector.broadcast %cst_8 : f32 to vector<8x32xf32>
    %14 = arith.mulf %13, %1 : vector<8x32xf32>
    %15 = arith.addf %12, %14 : vector<8x32xf32>
    %c0_9 = arith.constant 0 : index
    %c0_10 = arith.constant 0 : index
    %16 = vector.load %arg4[%c0_9, %c0_10] : memref<8x32xf32, #tpu.memory_space<vmem>>, vector<8x32xf32>
    tpu.vector_store %arg4[%c0_9, %c0_10], %15 {strides = array<i32>} : memref<8x32xf32, #tpu.memory_space<vmem>>, vector<8x32xf32>,
    return
  }
  func.func @transform_0(%arg0: i32) -> (i32, i32) {
    %c0_i32 = arith.constant 0 : i32
    %c0_i32_0 = arith.constant 0 : i32
    return %arg0, %c0_i32 : i32, i32
  }
  func.func @transform_1(%arg0: i32) -> (i32, i32) {
    %c0_i32 = arith.constant 0 : i32
    %c0_i32_0 = arith.constant 0 : i32
    return %arg0, %c0_i32 : i32, i32
  }
  func.func @transform_2(%arg0: i32) -> (i32, i32) {
    %c0_i32 = arith.constant 0 : i32
    %c0_i32_0 = arith.constant 0 : i32
    %c0_i32_1 = arith.constant 0 : i32
    return %c0_i32, %c0_i32_0 : i32, i32
  }
  func.func @transform_3(%arg0: i32) -> (i32, i32) {
    %c0_i32 = arith.constant 0 : i32
    %c0_i32_0 = arith.constant 0 : i32
    return %arg0, %c0_i32 : i32, i32
  }
}

</mosaic_0001>

<llo_original>
// kernel: tpu_custom_call.1
$region0: #{tpu_custom_call.1}
  #allocation0 [shape = 'u32[]', space=smem, size = 0x4, offset = 0x4, fixed_abs, tag = 'smem constant byte address 0x4 - core index']
  #allocation1 [shape = 'u32[144,128]{1,0:T(1,128)}', space=vmem, size = 0x12000, scoped, tag = 'internal scratch']
  %s0 = inlined_call_operand.hbm [shape: f32[8,32], index: 0, kind: input, shape index: {}]
  %s1 = inlined_call_operand.hbm [shape: f32[8,32], index: 1, kind: input, shape index: {}]
  %s2 = inlined_call_operand.hbm [shape: bf16[32,32], index: 2, kind: input, shape index: {}]
  %s3 = inlined_call_operand.hbm [shape: f32[8,32], index: 3, kind: output, shape index: {}]
  %s4 = sld [smem:[#allocation0]]
  $region34: #{tpu_custom_call.1} parent=0
    _
  %s6 = ssub.s32 1, %s4
  %s7 = scalar_select 0, %s6, %s4
  $region1: #{tpu_custom_call.1} parent=0
    #allocation2 [shape = 'u8[4096]{0}', space=vmem, size = 0x1000, scoped, tag = 'input window, operand 0, single buffered']
    #allocation3 [shape = 's32[1]{0}', space=sflag, size = 0x4, scoped, tag = 'scoped memory for tpu_custom_call.1']
    #allocation4 [shape = 's32[1]{0}', space=sflag, size = 0x4, scoped, tag = 'scoped memory for tpu_custom_call.1']
    #allocation5 [shape = 'u8[4096]{0}', space=vmem, size = 0x1000, scoped, tag = 'input window, operand 1, single buffered']
    #allocation6 [shape = 's32[1]{0}', space=sflag, size = 0x4, scoped, tag = 'scoped memory for tpu_custom_call.1']
    #allocation7 [shape = 'u8[8192]{0}', space=vmem, size = 0x2000, scoped, tag = 'input window, operand 2, single buffered']
    #allocation8 [shape = 'u8[4096]{0}', space=vmem, size = 0x1000, scoped, tag = 'output window, operand 0, single buffered']
    %8 = vsyncpa [#allocation3], 0
    %9 = vsyncpa [#allocation6], 0
    %10 = vsyncpa [#allocation4], 0
    // Predicated region
    $region2: #{tpu_custom_call.1} parent=1 // pred_check
      _
    $region3: #{tpu_custom_call.1} parent=1 // pred_check_branch
      %12 = sbr.rel (0) target = $region5
    $region4: #{tpu_custom_call.1} parent=1 // pred_region
      %s14 = ssub.s32 128, 128
      %15 = vsyncadd [#allocation3], %s14
      %s17 = sshll.u32 [#allocation2], 4
      %s18 = int_to_ptr.vmem [resolvable:$true] %s17
      %20 = dma.hbm_to_vmem [thread:$0]  %s0, 128, %s18, [#allocation3]
    $region5: #{tpu_custom_call.1} parent=1 // pred_fallthru
      _
    // Predicated region
    $region6: #{tpu_custom_call.1} parent=1 // pred_check
      _
    $region7: #{tpu_custom_call.1} parent=1 // pred_check_branch
      %22 = sbr.rel (0) target = $region9
    $region8: #{tpu_custom_call.1} parent=1 // pred_region
      %s24 = ssub.s32 128, 128
      %25 = vsyncadd [#allocation6], %s24
      %s27 = sshll.u32 [#allocation5], 4
      %s28 = int_to_ptr.vmem [resolvable:$true] %s27
      %30 = dma.hbm_to_vmem [thread:$0]  %s1, 128, %s28, [#allocation6]
    $region9: #{tpu_custom_call.1} parent=1 // pred_fallthru
      _
    // Predicated region
    $region10: #{tpu_custom_call.1} parent=1 // pred_check
      _
    $region11: #{tpu_custom_call.1} parent=1 // pred_check_branch
      %32 = sbr.rel (0) target = $region13
    $region12: #{tpu_custom_call.1} parent=1 // pred_region
      %s34 = ssub.s32 256, 256
      %35 = vsyncadd [#allocation6], %s34
      %s36 = sshll.u32 [#allocation7], 4
      %s37 = int_to_ptr.vmem [resolvable:$true] %s36
      %42 = dma.hbm_to_vmem [thread:$0]  %s2, 256, %s37, [#allocation6], 64, 64, 4
    $region13: #{tpu_custom_call.1} parent=1 // pred_fallthru
      _
    // Predicated region
    $region14: #{tpu_custom_call.1} parent=1 // pred_check
      _
    $region15: #{tpu_custom_call.1} parent=1 // pred_check_branch
      %44 = sbr.rel (0) target = $region17
    $region16: #{tpu_custom_call.1} parent=1 // pred_region
      %45 = dma.done [#allocation3], 128
    $region17: #{tpu_custom_call.1} parent=1 // pred_fallthru
      _
    // Predicated region
    $region18: #{tpu_custom_call.1} parent=1 // pred_check
      _
    $region19: #{tpu_custom_call.1} parent=1 // pred_check_branch
      %47 = sbr.rel (0) target = $region21
    $region20: #{tpu_custom_call.1} parent=1 // pred_region
      %48 = dma.done [#allocation6], 128
    $region21: #{tpu_custom_call.1} parent=1 // pred_fallthru
      _
    // Predicated region
    $region22: #{tpu_custom_call.1} parent=1 // pred_check
      _
    $region23: #{tpu_custom_call.1} parent=1 // pred_check_branch
      %50 = sbr.rel (0) target = $region25
    $region24: #{tpu_custom_call.1} parent=1 // pred_region
      %51 = dma.done [#allocation6], 256
    $region25: #{tpu_custom_call.1} parent=1 // pred_fallthru
      _
    %v53 = vld [vmem:[#allocation2] sm:$0xff]
    %v54 = vld [vmem:[#allocation5] sm:$0xff]
    %v55 = vmul.f32 %v53, 0.9
    %v56 = vmul.f32 %v54, 0.1
    %v57 = vadd.f32 %v55, %v56
    %v58 = vpack.c.bf16 %v57, %v57
    %v59 = vld [vmem:[#allocation7] sm:$0xf]
    %v60 = vld [vmem:[#allocation7 + $0x4] sm:$0xf]
    %v61 = vld [vmem:[#allocation7 + $0x8] sm:$0xf]
    %v62 = vld [vmem:[#allocation7 + $0xc] sm:$0xf]
    %v63 = vmul.f32 %v53, 1.6991708
    %v68 = vunpack.c.l.b16 %v59
    %v69 = vunpack.c.l.b16 %v60
    %v70 = vunpack.c.l.b16 %v61
    %v71 = vunpack.c.l.b16 %v62
    %v72 = vpack.c.b16 %v69, %v68
    %v73 = vpack.c.b16 %v71, %v70
    %vm76 = vcmask 261120
    %v78 = vsel %vm76, %v58, 0
    %80 = vmatprep.subr.bf16.mxu0 0
    %81 = vmatpush1.bf16.msra.mxu0 %v72
    %82 = vmatprep.subr.bf16.mxu0 0
    %83 = vmatpush1.bf16.msra.mxu0 %v73
    %84 = vmatprep.subr.bf16.mxu0 0
    %85 = vmatpush1.bf16.msra.mxu0 0
    %86 = vmatprep.subr.bf16.mxu0 0
    %87 = vmatpush1.bf16.msra.mxu0 0
    %88 = vmatprep.subr.bf16.mxu0 0
    %89 = vmatpush1.bf16.msra.mxu0 0
    %90 = vmatprep.subr.bf16.mxu0 0
    %91 = vmatpush1.bf16.msra.mxu0 0
    %92 = vmatprep.subr.bf16.mxu0 0
    %93 = vmatpush1.bf16.msra.mxu0 0
    %94 = vmatprep.subr.bf16.mxu0 0
    %95 = vmatpush1.bf16.msra.mxu0 0
    %96 = vmatprep.subr.bf16.mxu0 0
    %97 = vmatpush1.bf16.msra.mxu0 0
    %98 = vmatprep.subr.bf16.mxu0 0
    %99 = vmatpush1.bf16.msra.mxu0 0
    %100 = vmatprep.subr.bf16.mxu0 0
    %101 = vmatpush1.bf16.msra.mxu0 0
    %102 = vmatprep.subr.bf16.mxu0 0
    %103 = vmatpush1.bf16.msra.mxu0 0
    %104 = vmatprep.subr.bf16.mxu0 0
    %105 = vmatpush1.bf16.msra.mxu0 0
    %106 = vmatprep.subr.bf16.mxu0 0
    %107 = vmatpush1.bf16.msra.mxu0 0
    %108 = vmatprep.subr.bf16.mxu0 0
    %109 = vmatpush1.bf16.msra.mxu0 0
    %110 = vmatprep.subr.bf16.mxu0 0
    %111 = vmatpush1.bf16.msra.mxu0 0
    %112 = vmatprep.mubr.bf16.mxu0 0
    %113 = vmatmul.mubr.bf16.gmra.mrb[0].mxu0 %v78
    %v114 = vpop.f32.mrb[0].mxu0
    %v115 = vadd.f32 %v63, %v114
    %v116 = vpop.f32.mrb[0].mxu0
    %v117 = vpop.f32.mrb[0].mxu0
    %v118 = vpop.f32.mrb[0].mxu0
    %119 = vdwg.mxu0
    %v120 = vmul.f32 %v54, 0.07768565
    %v121 = vadd.f32 %v115, %v120
    %122 = vst.msk [vmem:[#allocation8] sm:$0xff] %vm76, %v121
    // Predicated region
    $region26: #{tpu_custom_call.1} parent=1 // pred_check
      _
    $region27: #{tpu_custom_call.1} parent=1 // pred_check_branch
      %124 = sbr.rel (0) target = $region29
    $region28: #{tpu_custom_call.1} parent=1 // pred_region
      %s126 = ssub.s32 128, 128
      %127 = vsyncadd [#allocation4], %s126
      %s129 = sshll.u32 [#allocation8], 4
      %s130 = int_to_ptr.vmem [resolvable:$true] %s129
      %132 = dma.vmem_to_hbm [thread:$0]  %s130, 128, %s3, [#allocation4]
    $region29: #{tpu_custom_call.1} parent=1 // pred_fallthru
      _
    // Predicated region
    $region30: #{tpu_custom_call.1} parent=1 // pred_check
      _
    $region31: #{tpu_custom_call.1} parent=1 // pred_check_branch
      %134 = sbr.rel (0) target = $region33
    $region32: #{tpu_custom_call.1} parent=1 // pred_region
      %135 = dma.done [#allocation4], 128
    $region33: #{tpu_custom_call.1} parent=1 // pred_fallthru
      _
    %136 = vsyncpa [#allocation3], 1
    %137 = vsyncpa [#allocation6], 1
    %138 = vsyncpa [#allocation4], 1

</llo_original>
